<compile_context>
chip_gen: v6e
topology: v6e:2x2x1
jax: 0.10.0
libtpu: 0.0.40
codegen_flags: <defaults>
</compile_context>

<pallas_src>
import functools

import jax
import jax.numpy as jnp
from jax.experimental import pallas as pl
from jax.experimental.pallas import tpu as pltpu


_VMEM_LIMIT_BYTES = 32 * 1024 * 1024     # scoped-VMEM limit (safe default on v5e/v6e/v7x)
_BLOCK_BUDGET_BYTES = 24 * 1024 * 1024   # working-tile budget (leaves headroom for internals)
_MAX_DENSE_M_BYTES = 8 * 1024 * 1024     # guard for the dense conv-as-matmul matrix


def _gaussian_kernel_1d(ksize, sigma):
    # Matches getGaussiankernel(ksize, sigma) from spa_down.py.
    xs = jnp.arange(-(ksize - 1) // 2, (ksize - 1) // 2 + 1, dtype=jnp.float32)
    k = jnp.exp(-0.5 * jnp.square(xs / sigma))
    return k / jnp.sum(k)


def _conv_as_matmul_matrix(H, W, Hout, Wout, stride, k2d):
    """M (H*W, Hout*Wout) s.t. x.reshape(H*W) @ M == VALID cross-correlation with `stride`."""
    ksize = int(k2d.shape[0])
    ph = jnp.arange(H)[:, None, None, None] - jnp.arange(Hout)[None, None, :, None] * stride
    pw = jnp.arange(W)[None, :, None, None] - jnp.arange(Wout)[None, None, None, :] * stride
    valid = (ph >= 0) & (ph < ksize) & (pw >= 0) & (pw < ksize)
    vals = k2d[jnp.clip(ph, 0, ksize - 1), jnp.clip(pw, 0, ksize - 1)]
    m = jnp.where(valid, vals, jnp.float32(0.0))          # (H, W, Hout, Wout)
    # bf16 weights: default-precision MXU rounds operands to bf16 regardless, so this is
    # numerically free while halving M's HBM traffic and VMEM footprint.
    return m.reshape(H * W, Hout * Wout).astype(jnp.bfloat16)


def _spa_down_rows_kernel(x_ref, m_ref, o_ref):
    # Channels-on-sublanes layout.
    # x_ref: (cb, H*W)        lane-dense block of flattened per-channel planes
    # m_ref: (H*W, Hout*Wout) frozen conv-as-matmul weights (bf16, grid-invariant)
    # o_ref: (cb, Hout*Wout)
    y = jnp.dot(x_ref[...], m_ref[...], preferred_element_type=jnp.float32)
    o_ref[...] = y.astype(o_ref.dtype)


def _spa_down_cols_kernel(mt_ref, xt_ref, o_ref):
    # Channels-on-lanes layout (used when nc >= 128 and Hout*Wout < 128).
    # mt_ref: (Hout*Wout, H*W) bf16, grid-invariant
    # xt_ref: (H*W, cb)        channels on the lane axis
    # o_ref : (Hout*Wout, cb)  lane-dense output stores
    y = jnp.dot(mt_ref[...], xt_ref[...], preferred_element_type=jnp.float32)
    o_ref[...] = y.astype(o_ref.dtype)


def _resident_spec(block_shape, index_map):
    # Grid-invariant operand: single-buffer it (a second pipeline buffer is pure VMEM waste).
    try:
        return pl.BlockSpec(block_shape, index_map, pipeline_mode=pl.Buffered(1))
    except TypeError:  # older BlockSpec signature without pipeline_mode
        return pl.BlockSpec(block_shape, index_map)


def _pick_block(n_items, bytes_per_item, resident_bytes, align, budget):
    """Items (channels) per grid step: double-buffered in+out must fit in `budget`."""
    blk = (budget - resident_bytes) // max(2 * bytes_per_item, 1)
    blk = max(align, blk // align * align)
    # Keep >= 2 grid steps when there is enough work so v7x's second TensorCore
    # gets a share under dimension_semantics=("parallel",).
    if blk >= n_items and n_items >= 2 * align:
        blk = pl.cdiv(pl.cdiv(n_items, 2), align) * align
    return min(blk, n_items)


@functools.partial(jax.jit, static_argnums=(1,))
def spatial_degradation(x, sf, predefine=None):
    """Matches Spatial_Degradation(sf, predefine).forward(x) for x of shape (1, C, H, W).

    The frozen per-channel conv is applied to every (n, c) plane independently
    (the module's transpose trick; its forward implies batch == 1).
    """
    N, C, H, W = x.shape
    if predefine is not None:
        k2d = jnp.asarray(predefine, dtype=jnp.float32)
    else:
        k1 = _gaussian_kernel_1d(sf, sf // 1.5)
        k2d = jnp.outer(k1, k1)
    ksize = int(k2d.shape[0])
    stride = sf - 1                       # nn.Conv2d(..., stride=stride - 1)
    if stride < 1:
        raise ValueError("Spatial_Degradation requires sf >= 2 (Conv2d stride = sf - 1 > 0).")
    Hout = (H - ksize) // stride + 1
    Wout = (W - ksize) // stride + 1
    if Hout < 1 or Wout < 1:
        raise ValueError("Input spatial dims too small for the degradation kernel.")

    hw, hwo = H * W, Hout * Wout
    nc = N * C
    m_bytes = hw * hwo * 2                # bf16
    if m_bytes > _MAX_DENSE_M_BYTES:
        # TODO(synk): switch to a separable row-then-column (two small matmuls)
        # formulation for large H*W instead of the dense conv-as-matmul matrix.
        raise NotImplementedError("H*W too large for the dense conv-as-matmul path.")

    m = _conv_as_matmul_matrix(H, W, Hout, Wout, stride, k2d)   # (hw, hwo) bf16
    x_flat = x.reshape(nc, hw)
    x_isz = jnp.dtype(x.dtype).itemsize
    bytes_per_chan = hw * x_isz + hwo * x_isz
    cparams = pltpu.CompilerParams(
        dimension_semantics=("parallel",),
        vmem_limit_bytes=_VMEM_LIMIT_BYTES,
    )

    if nc >= 128 and hwo < 128:
        # Channels-on-lanes path: lane-dense output stores when Hout*Wout < 128.
        cb = _pick_block(nc, bytes_per_chan, m_bytes, 128, _BLOCK_BUDGET_BYTES)
        out_t = pl.pallas_call(
            _spa_down_cols_kernel,
            out_shape=jax.ShapeDtypeStruct((hwo, nc), x.dtype),
            grid_spec=pltpu.PrefetchScalarGridSpec(
                num_scalar_prefetch=0,
                grid=(pl.cdiv(nc, cb),),
                in_specs=[
                    _resident_spec((hwo, hw), lambda i: (0, 0)),
                    pl.BlockSpec((hw, cb), lambda i: (0, i)),
                ],
                out_specs=pl.BlockSpec((hwo, cb), lambda i: (0, i)),
            ),
            compiler_params=cparams,
        )(m.T, x_flat.T)
        return out_t.T.reshape(N, C, Hout, Wout)

    # Channels-on-sublanes path (small channel count): flattened plane on the lane axis.
    sub_align = 8 if x_isz >= 4 else 16   # bf16 packs (16, 128) per vreg
    cb = _pick_block(nc, bytes_per_chan, m_bytes, sub_align, _BLOCK_BUDGET_BYTES)
    out_flat = pl.pallas_call(
        _spa_down_rows_kernel,
        out_shape=jax.ShapeDtypeStruct((nc, hwo), x.dtype),
        grid_spec=pltpu.PrefetchScalarGridSpec(
            num_scalar_prefetch=0,
            grid=(pl.cdiv(nc, cb),),
            in_specs=[
                pl.BlockSpec((cb, hw), lambda i: (i, 0)),
                _resident_spec((hw, hwo), lambda i: (0, 0)),
            ],
            out_specs=pl.BlockSpec((cb, hwo), lambda i: (i, 0)),
        ),
        compiler_params=cparams,
    )(x_flat, m)
    return out_flat.reshape(N, C, Hout, Wout)


if __name__ == "__main__":
    sf = 4
    key1, key2 = jax.random.split(jax.random.PRNGKey(0))

    def reference(x, sf):
        N, C, H, W = x.shape
        k1 = _gaussian_kernel_1d(sf, sf // 1.5)
        k2d = jnp.outer(k1, k1)
        stride = sf - 1
        Hout = (H - sf) // stride + 1
        Wout = (W - sf) // stride + 1
        return jax.lax.conv_general_dilated(
            x.reshape(N * C, 1, H, W),
            k2d[None, None, :, :],
            window_strides=(stride, stride),
            padding="VALID",
            dimension_numbers=("NCHW", "OIHW", "NCHW"),
            precision=jax.lax.Precision.HIGHEST,
        ).reshape(N, C, Hout, Wout)

    # Case 1: small channel count -> channels-on-sublanes path.
    # (The module's forward — transpose trick + Conv2d(in_channels=1) — implies batch == 1.)
    x1 = jax.random.normal(key1, (1, 4, 16, 16), dtype=jnp.float32)
    out1 = jax.block_until_ready(spatial_degradation(x1, sf))
    ref1 = reference(x1, sf)
    assert out1.shape == ref1.shape
    # Tolerance covers bf16 operand rounding on the MXU (default matmul precision);
    # structural/indexing bugs would show errors orders of magnitude larger.
    assert jnp.allclose(out1, ref1, atol=1e-2, rtol=1e-2), float(jnp.max(jnp.abs(out1 - ref1)))

    # Case 2: larger channel count -> lane-dense channels-on-lanes path, >= 2 grid steps.
    x2 = jax.random.normal(key2, (1, 256, 16, 16), dtype=jnp.float32)
    out2 = jax.block_until_ready(spatial_degradation(x2, sf))
    ref2 = reference(x2, sf)
    assert out2.shape == ref2.shape
    assert jnp.allclose(out2, ref2, atol=1e-2, rtol=1e-2), float(jnp.max(jnp.abs(out2 - ref2)))

    print("KERNEL_OK")
</pallas_src>

<mosaic_0001>
module attributes {stable_mosaic.version = 11 : i64} {
  func.func @_spa_down_rows_kernel(%arg0: i32, %arg1: memref<4x256xf32, #tpu.memory_space<vmem>>, %arg2: memref<256x25xbf16, #tpu.memory_space<vmem>>, %arg3: memref<4x25xf32, #tpu.memory_space<vmem>>) attributes {dimension_semantics = [#tpu.dimension_semantics<parallel>], iteration_bounds = array<i64: 1>, scalar_prefetch = 0 : i64, scratch_operands = 0 : i64, tpu.core_type = #tpu.core_type<tc>, window_params = [{transform_indices = @transform_0, window_bounds = array<i64: 4, 256>}, {pipeline_mode = #tpu.pipeline_mode<synchronous>, transform_indices = @transform_1, window_bounds = array<i64: 256, 25>}, {transform_indices = @transform_2, window_bounds = array<i64: 4, 25>}]} {
    %c0 = arith.constant 0 : index
    %c0_0 = arith.constant 0 : index
    %0 = vector.load %arg1[%c0, %c0_0] : memref<4x256xf32, #tpu.memory_space<vmem>>, vector<4x256xf32>
    %c0_1 = arith.constant 0 : index
    %c0_2 = arith.constant 0 : index
    %1 = vector.load %arg2[%c0_1, %c0_2] : memref<256x25xbf16, #tpu.memory_space<vmem>>, vector<256x25xbf16>
    %cst = arith.constant dense<0.000000e+00> : vector<4x25xf32>
    %2 = tpu.matmul %0, %1, %cst {dimension_numbers = #tpu.dot_dimension_numbers<[1], [0], [0], [1], [0, 0, 1, 1], [], []>} : vector<4x256xf32>, vector<256x25xbf16>, vector<4x25xf32> -> vector<4x25xf32>
    %c0_3 = arith.constant 0 : index
    %c0_4 = arith.constant 0 : index
    %3 = vector.load %arg3[%c0_3, %c0_4] : memref<4x25xf32, #tpu.memory_space<vmem>>, vector<4x25xf32>
    tpu.vector_store %arg3[%c0_3, %c0_4], %2 {strides = array<i32>} : memref<4x25xf32, #tpu.memory_space<vmem>>, vector<4x25xf32>,
    return
  }
  func.func @transform_0(%arg0: i32) -> (i32, i32) {
    %c0_i32 = arith.constant 0 : i32
    %c0_i32_0 = arith.constant 0 : i32
    return %arg0, %c0_i32 : i32, i32
  }
  func.func @transform_1(%arg0: i32) -> (i32, i32) {
    %c0_i32 = arith.constant 0 : i32
    %c0_i32_0 = arith.constant 0 : i32
    %c0_i32_1 = arith.constant 0 : i32
    return %c0_i32, %c0_i32_0 : i32, i32
  }
  func.func @transform_2(%arg0: i32) -> (i32, i32) {
    %c0_i32 = arith.constant 0 : i32
    %c0_i32_0 = arith.constant 0 : i32
    return %arg0, %c0_i32 : i32, i32
  }
}

</mosaic_0001>

<llo_original>
// kernel: spatial_degradation.1
$region0: #{spatial_degradation.1}
  #allocation0 [shape = 'u32[]', space=smem, size = 0x4, offset = 0x4, fixed_abs, tag = 'smem constant byte address 0x4 - core index']
  #allocation1 [shape = 'u32[144,128]{1,0:T(1,128)}', space=vmem, size = 0x12000, scoped, tag = 'internal scratch']
  %s0 = inlined_call_operand.vmem [shape: f32[4,256], index: 0, kind: input, shape index: {}]
  %s1 = inlined_call_operand.vmem [shape: bf16[256,25], index: 1, kind: input, shape index: {}]
  %s2 = inlined_call_operand.vmem [shape: f32[4,25], index: 2, kind: output, shape index: {}]
  %s3 = sld [smem:[#allocation0]]
  $region18: #{spatial_degradation.1} parent=0
    _
  %s5 = ssub.s32 1, %s3
  %s6 = scalar_select 0, %s5, %s3
  // Predicated region
  $region2: #{spatial_degradation.1} parent=0 // pred_check
    _
  $region3: #{spatial_degradation.1} parent=0 // pred_check_branch
    %8 = sbr.rel (0) target = $region5
  $region4: #{spatial_degradation.1} parent=0 // pred_region
    _
  $region5: #{spatial_degradation.1} parent=0 // pred_fallthru
    _
  // Predicated region
  $region6: #{spatial_degradation.1} parent=0 // pred_check
    _
  $region7: #{spatial_degradation.1} parent=0 // pred_check_branch
    %10 = sbr.rel (0) target = $region9
  $region8: #{spatial_degradation.1} parent=0 // pred_region
    _
  $region9: #{spatial_degradation.1} parent=0 // pred_fallthru
    _
  %v12 = vld [vmem:[%s0] sm:$0xff]
  %v13 = vld [vmem:[%s1] sm:$0xf]
  %v14 = vld [vmem:[%s1 + $0x4] sm:$0xf]
  %v15 = vld [vmem:[%s1 + $0x8] sm:$0xf]
  %v16 = vld [vmem:[%s1 + $0xc] sm:$0xf]
  %v17 = vld [vmem:[%s1 + $0x10] sm:$0xf]
  %v18 = vld [vmem:[%s1 + $0x14] sm:$0xf]
  %v19 = vld [vmem:[%s1 + $0x18] sm:$0xf]
  %v20 = vld [vmem:[%s1 + $0x1c] sm:$0xf]
  %v21 = vld [vmem:[%s1 + $0x20] sm:$0xf]
  %v22 = vld [vmem:[%s1 + $0x24] sm:$0xf]
  %v23 = vld [vmem:[%s1 + $0x28] sm:$0xf]
  %v24 = vld [vmem:[%s1 + $0x2c] sm:$0xf]
  %v25 = vld [vmem:[%s1 + $0x30] sm:$0xf]
  %v26 = vld [vmem:[%s1 + $0x34] sm:$0xf]
  %v27 = vld [vmem:[%s1 + $0x38] sm:$0xf]
  %v28 = vld [vmem:[%s1 + $0x3c] sm:$0xf]
  %v29 = vld [vmem:[%s1 + $0x40] sm:$0xf]
  %v30 = vld [vmem:[%s1 + $0x44] sm:$0xf]
  %v31 = vld [vmem:[%s1 + $0x48] sm:$0xf]
  %v32 = vld [vmem:[%s1 + $0x4c] sm:$0xf]
  %v33 = vld [vmem:[%s1 + $0x50] sm:$0xf]
  %v34 = vld [vmem:[%s1 + $0x54] sm:$0xf]
  %v35 = vld [vmem:[%s1 + $0x58] sm:$0xf]
  %v36 = vld [vmem:[%s1 + $0x5c] sm:$0xf]
  %v37 = vld [vmem:[%s1 + $0x60] sm:$0xf]
  %v38 = vld [vmem:[%s1 + $0x64] sm:$0xf]
  %v39 = vld [vmem:[%s1 + $0x68] sm:$0xf]
  %v40 = vld [vmem:[%s1 + $0x6c] sm:$0xf]
  %v41 = vld [vmem:[%s1 + $0x70] sm:$0xf]
  %v42 = vld [vmem:[%s1 + $0x74] sm:$0xf]
  %v43 = vld [vmem:[%s1 + $0x78] sm:$0xf]
  %v44 = vld [vmem:[%s1 + $0x7c] sm:$0xf]
  %v46 = vcombine.high %v12, %v12
  %v80 = vunpack.c.l.b16 %v13
  %v81 = vunpack.c.l.b16 %v14
  %v82 = vunpack.c.l.b16 %v15
  %v83 = vunpack.c.l.b16 %v16
  %v84 = vunpack.c.l.b16 %v17
  %v85 = vunpack.c.l.b16 %v18
  %v86 = vunpack.c.l.b16 %v19
  %v87 = vunpack.c.l.b16 %v20
  %v88 = vunpack.c.l.b16 %v21
  %v89 = vunpack.c.l.b16 %v22
  %v90 = vunpack.c.l.b16 %v23
  %v91 = vunpack.c.l.b16 %v24
  %v92 = vunpack.c.l.b16 %v25
  %v93 = vunpack.c.l.b16 %v26
  %v94 = vunpack.c.l.b16 %v27
  %v95 = vunpack.c.l.b16 %v28
  %v96 = vunpack.c.l.b16 %v29
  %v97 = vunpack.c.l.b16 %v30
  %v98 = vunpack.c.l.b16 %v31
  %v99 = vunpack.c.l.b16 %v32
  %v100 = vunpack.c.l.b16 %v33
  %v101 = vunpack.c.l.b16 %v34
  %v102 = vunpack.c.l.b16 %v35
  %v103 = vunpack.c.l.b16 %v36
  %v104 = vunpack.c.l.b16 %v37
  %v105 = vunpack.c.l.b16 %v38
  %v106 = vunpack.c.l.b16 %v39
  %v107 = vunpack.c.l.b16 %v40
  %v108 = vunpack.c.l.b16 %v41
  %v109 = vunpack.c.l.b16 %v42
  %v110 = vunpack.c.l.b16 %v43
  %v111 = vunpack.c.l.b16 %v44
  %v112 = vpack.c.b16 %v81, %v80
  %v113 = vpack.c.b16 %v83, %v82
  %v114 = vpack.c.b16 %v85, %v84
  %v115 = vpack.c.b16 %v87, %v86
  %v116 = vpack.c.b16 %v89, %v88
  %v117 = vpack.c.b16 %v91, %v90
  %v118 = vpack.c.b16 %v93, %v92
  %v119 = vpack.c.b16 %v95, %v94
  %v120 = vpack.c.b16 %v97, %v96
  %v121 = vpack.c.b16 %v99, %v98
  %v122 = vpack.c.b16 %v101, %v100
  %v123 = vpack.c.b16 %v103, %v102
  %v124 = vpack.c.b16 %v105, %v104
  %v125 = vpack.c.b16 %v107, %v106
  %v126 = vpack.c.b16 %v109, %v108
  %v127 = vpack.c.b16 %v111, %v110
  %144 = vmatprep.subr.bf16.mxu0 0
  %145 = vmatpush1.bf16.msra.mxu0 %v119
  %146 = vmatprep.subr.bf16.mxu0 0
  %147 = vmatpush1.bf16.msra.mxu0 %v118
  %148 = vmatprep.subr.bf16.mxu0 0
  %149 = vmatpush1.bf16.msra.mxu0 %v117
  %150 = vmatprep.subr.bf16.mxu0 0
  %151 = vmatpush1.bf16.msra.mxu0 %v116
  %152 = vmatprep.subr.bf16.mxu0 0
  %153 = vmatpush1.bf16.msra.mxu0 %v115
  %154 = vmatprep.subr.bf16.mxu0 0
  %155 = vmatpush1.bf16.msra.mxu0 %v114
  %156 = vmatprep.subr.bf16.mxu0 0
  %157 = vmatpush1.bf16.msra.mxu0 %v113
  %158 = vmatprep.subr.bf16.mxu0 0
  %159 = vmatpush1.bf16.msra.mxu0 %v112
  %160 = vmatprep.subr.bf16.mxu0 0
  %161 = vmatpush2.bf16.msra.mxu0 %v127
  %162 = vmatprep.subr.bf16.mxu0 0
  %163 = vmatpush2.bf16.msra.mxu0 %v126
  %164 = vmatprep.subr.bf16.mxu0 0
  %165 = vmatpush2.bf16.msra.mxu0 %v125
  %166 = vmatprep.subr.bf16.mxu0 0
  %167 = vmatpush2.bf16.msra.mxu0 %v124
  %168 = vmatprep.subr.bf16.mxu0 0
  %169 = vmatpush2.bf16.msra.mxu0 %v123
  %170 = vmatprep.subr.bf16.mxu0 0
  %171 = vmatpush2.bf16.msra.mxu0 %v122
  %172 = vmatprep.subr.bf16.mxu0 0
  %173 = vmatpush2.bf16.msra.mxu0 %v121
  %174 = vmatprep.subr.bf16.mxu0 0
  %175 = vmatpush2.bf16.msra.mxu0 %v120
  %176 = vmatprep.mubr.f32.mxu0 %v46
  %177 = vmatmul.mubr.f32.gmra.mxu0 %v12
  %v178 = vpop.f32.mrf.mxu0
  %v179 = vadd.f32 0.0, %v178
  %v180 = vpop.f32.mrf.mxu0
  %181 = vdwg.mxu0
  %vm182 = vcmask 199680
  %183 = vst.msk [vmem:[%s2] sm:$0xf] %vm182, %v179
  // Predicated region
  $region10: #{spatial_degradation.1} parent=0 // pred_check
    _
  $region11: #{spatial_degradation.1} parent=0 // pred_check_branch
    %185 = sbr.rel (0) target = $region13
  $region12: #{spatial_degradation.1} parent=0 // pred_region
    _
  $region13: #{spatial_degradation.1} parent=0 // pred_fallthru
    _
  // Predicated region
  $region14: #{spatial_degradation.1} parent=0 // pred_check
    _
  $region15: #{spatial_degradation.1} parent=0 // pred_check_branch
    %187 = sbr.rel (0) target = $region17
  $region16: #{spatial_degradation.1} parent=0 // pred_region
    _
  $region17: #{spatial_degradation.1} parent=0 // pred_fallthru
    _

</llo_original>
